<compile_context>
chip_gen: v6e
topology: v6e:2x2x1
jax: 0.10.0
libtpu: 0.0.40
codegen_flags: <defaults>
</compile_context>

<pallas_src>
import functools

import jax
import jax.numpy as jnp
from jax.experimental import pallas as pl
from jax.experimental.pallas import tpu as pltpu


# --------------------------------------------------------------------------- #
# Constant per-head reduction matrix (built once on host, passed as an input)  #
#   seg_aug[c, h]      = 1 if c//HD == h and c <  C   (per-head key reduction) #
#   seg_aug[C + c, H]  = 1                           (sum of v^2 column)       #
# --------------------------------------------------------------------------- #
def _make_seg_aug(C, H):
    HD = C // H
    col = jnp.arange(2 * C)[:, None]           # [2C, 1]
    head = jnp.arange(H + 1)[None, :]          # [1, H+1]
    per_head = (col < C) & ((col // HD) == head)
    vnorm_col = (col >= C) & (head == H)
    return (per_head | vnorm_col).astype(jnp.float32)   # [2C, H+1]


def _pad_batch(a, mult):
    B = a.shape[0]
    Bpad = pl.cdiv(B, mult) * mult
    if Bpad != B:
        pad = [(0, Bpad - B)] + [(0, 0)] * (a.ndim - 1)
        a = jnp.pad(a, pad)
    return a, Bpad


# --------------------------------------------------------------------------- #
# Kernel 1: selection-score kernel                                             #
#   score[b, j] = (sum_h softmax_j(q0 . k_j / sqrt(HD))[h]) * ||v_j||_2        #
# --------------------------------------------------------------------------- #
def _selection_kernel(x_ref, wq_ref, wkv_ref, seg_ref, score_ref, *, H, scale):
    Bb, N, C = x_ref.shape
    xb = x_ref[...]                                       # [Bb, N, C] bf16

    # Only token 0's query is ever used -> tiny [Bb, C] x [C, C] matmul.
    q0 = jnp.dot(xb[:, 0, :], wq_ref[...],
                 preferred_element_type=jnp.float32) * scale          # [Bb, C]

    # K, V projection: the dominant matmul, bf16 operands, f32 accumulation.
    kv = jnp.dot(xb.reshape(Bb * N, C), wkv_ref[...],
                 preferred_element_type=jnp.float32)                  # [Bb*N, 2C]
    kv = kv.reshape(Bb, N, 2 * C)
    k = kv[:, :, :C]                                                  # [Bb, N, C]
    v = kv[:, :, C:]                                                  # [Bb, N, C]

    # Per-head q0.k reduction AND sum(v^2) folded into one f32 MXU matmul
    # against the constant block-diagonal matrix (no per-step iota rebuild).
    qk = k * q0[:, None, :]                                           # [Bb, N, C]
    feats = jnp.concatenate([qk, v * v], axis=2).reshape(Bb * N, 2 * C)
    red = jnp.dot(feats, seg_ref[...],
                  preferred_element_type=jnp.float32).reshape(Bb, N, H + 1)
    s = red[:, :, :H]                                                 # [Bb, N, H]
    vsq = red[:, :, H]                                                # [Bb, N]

    # Softmax over keys (row 0 of the full attention matrix), per head.
    m = jnp.max(s, axis=1, keepdims=True)                             # [Bb, 1, H]
    p = jnp.exp(s - m)
    denom = jnp.sum(p, axis=1, keepdims=True)                         # [Bb, 1, H]
    p = p * pl.reciprocal(denom, approx=True)                         # EUP slot

    # score[b, j] = (sum_h attn[b, h, 0, j]) * ||v_j||
    score_ref[:, 0, :] = jnp.sum(p, axis=2) * jnp.sqrt(vsq)           # [Bb, N]


def selection_scores(x, wq_t, wkv_t, seg_aug, num_heads, block_b=8):
    B, N, C = x.shape
    scale = (C // num_heads) ** -0.5
    Bb = min(block_b, B)
    x_bf, Bpad = _pad_batch(x.astype(jnp.bfloat16), Bb)   # bf16 halves x DMA too

    kernel = functools.partial(_selection_kernel, H=num_heads, scale=scale)
    # Blocks here are tiny; at real ViT sizes keep Bb modest on v7x (64 MiB
    # VMEM / 32 MiB scoped default) or raise vmem_limit_bytes explicitly.
    out = pl.pallas_call(
        kernel,
        out_shape=jax.ShapeDtypeStruct((Bpad, 1, N), jnp.float32),
        grid=(Bpad // Bb,),
        in_specs=[
            pl.BlockSpec((Bb, N, C), lambda b: (b, 0, 0)),
            pl.BlockSpec((C, C), lambda b: (0, 0)),
            pl.BlockSpec((C, 2 * C), lambda b: (0, 0)),
            pl.BlockSpec((2 * C, num_heads + 1), lambda b: (0, 0)),
        ],
        out_specs=pl.BlockSpec((Bb, 1, N), lambda b: (b, 0, 0)),
        compiler_params=pltpu.CompilerParams(dimension_semantics=("parallel",)),
    )(x_bf, wq_t, wkv_t, seg_aug)
    return out[:B, 0, :]                                              # [B, N]


# --------------------------------------------------------------------------- #
# Kernel 2: tokens_to_pick_ind[b, i] = argmin_j |ys[i] - norm_cdf[b, j]|       #
# (first index of the minimum, matching torch.min(dim)[1] tie behaviour)       #
# --------------------------------------------------------------------------- #
def _pick_kernel(cdf_ref, ys_ref, ind_ref):
    Bb, _, Nm1 = cdf_ref.shape
    cdf = cdf_ref[:, 0, :]                               # [Bb, Nm1]
    ys = ys_ref[...]                                     # [Nm1, 1]
    diff = jnp.abs(ys[None, :, :] - cdf[:, None, :])     # [Bb, Nm1, Nm1]
    min_val = jnp.min(diff, axis=2, keepdims=True)       # [Bb, Nm1, 1]
    jidx = jax.lax.broadcasted_iota(jnp.int32, (1, 1, Nm1), 2)
    cand = jnp.where(diff == min_val, jidx, Nm1)         # non-min -> sentinel
    ind_ref[:, 0, :] = jnp.min(cand, axis=2)             # first argmin, [Bb, Nm1]


def pick_indices(norm_cdf, ys_vec, block_b=8):
    B, Nm1 = norm_cdf.shape
    Bb = min(block_b, B)
    cdf3, Bpad = _pad_batch(norm_cdf.reshape(B, 1, Nm1), Bb)
    out = pl.pallas_call(
        _pick_kernel,
        out_shape=jax.ShapeDtypeStruct((Bpad, 1, Nm1), jnp.int32),
        grid=(Bpad // Bb,),
        in_specs=[
            pl.BlockSpec((Bb, 1, Nm1), lambda b: (b, 0, 0)),
            pl.BlockSpec((Nm1, 1), lambda b: (0, 0)),
        ],
        out_specs=pl.BlockSpec((Bb, 1, Nm1), lambda b: (b, 0, 0)),
        compiler_params=pltpu.CompilerParams(dimension_semantics=("parallel",)),
    )(cdf3, ys_vec.reshape(Nm1, 1))
    return out[:B, 0, :]                                 # [B, Nm1] int32


# --------------------------------------------------------------------------- #
# Full QuerySelector.forward                                                   #
# --------------------------------------------------------------------------- #
def query_selector_forward(params, x, n, raw_x, policy, num_heads=8):
    B, N, C = x.shape
    del n  # `n` is overwritten with norm_cdf.shape[2] + 1 (== N) in the reference forward

    seg_aug = _make_seg_aug(C, num_heads)
    score = selection_scores(x, params["wq_t"], params["wkv_t"],
                             seg_aug, num_heads)                      # [B, N]

    sel = score[:, 1:]                                                # drop CLS token
    sel = sel / jnp.sum(sel, axis=1, keepdims=True)

    sorted_ind = jnp.argsort(sel, axis=1)                             # ascending
    sorted_scores = jnp.take_along_axis(sel, sorted_ind, axis=1)
    cdf = jnp.cumsum(sorted_scores, axis=1)
    cmin = jnp.min(cdf, axis=1, keepdims=True)
    cmax = jnp.max(cdf, axis=1, keepdims=True)
    norm_cdf = (cdf - cmin) / jnp.maximum(cmax - cmin, 1e-12)         # [B, N-1]

    ys_vec = params["ys"][0, :N - 1]                                  # [N-1]
    ind = pick_indices(norm_cdf, ys_vec)                              # [B, N-1]

    raw_sorted = jnp.take_along_axis(raw_x[:, 1:], sorted_ind[:, :, None], axis=1)
    picked = jnp.take_along_axis(raw_sorted, ind[:, :, None], axis=1)
    selected_x = jnp.concatenate([raw_x[:, 0:1], picked], axis=1)     # [B, N, C]

    x_out = x  # proj_drop has p=0.0 -> identity
    return x_out, selected_x, None, policy


def init_params(key, dim_in):
    kw, kb = jax.random.split(key)
    # torch nn.Linear(dim, 3*dim, bias=False) weight is [3C, C]; store transposed,
    # split into q / kv halves, and cast to bf16 for the MXU.
    wqkv = jax.random.normal(kw, (3 * dim_in, dim_in), jnp.float32) * 0.02
    wqkv_t = wqkv.T                                                   # [C, 3C] f32
    ys = jnp.linspace(0.0, 1.0, 196, dtype=jnp.float32).reshape(1, 196)
    bin_sizes = jax.random.uniform(kb, (1, 103), dtype=jnp.float32)   # unused in forward
    return {
        "wqkv_t": wqkv_t,                                             # f32 reference copy
        "wq_t": wqkv_t[:, :dim_in].astype(jnp.bfloat16),              # [C, C]  bf16
        "wkv_t": wqkv_t[:, dim_in:].astype(jnp.bfloat16),             # [C, 2C] bf16
        "ys": ys,
        "bin_sizes": bin_sizes,
    }


if __name__ == "__main__":
    key = jax.random.PRNGKey(0)
    B, N, C, H = 2, 8, 32, 8
    kx, kr, kp, kc = jax.random.split(key, 4)
    x = jax.random.normal(kx, (B, N, C), jnp.float32)
    raw_x = jax.random.normal(kr, (B, N, C), jnp.float32)
    params = init_params(kp, C)

    x_out, selected_x, _, policy = query_selector_forward(
        params, x, 0.5, raw_x, None, num_heads=H
    )
    jax.block_until_ready((x_out, selected_x))

    # --- validation of kernel 1 against pure JAX (same bf16 MXU operands) ---
    HD = C // H
    x_bf = x.astype(jnp.bfloat16)
    w_bf = params["wqkv_t"].astype(jnp.bfloat16)
    qkv = jnp.dot(x_bf, w_bf, preferred_element_type=jnp.float32)     # [B, N, 3C]
    qkv = qkv.reshape(B, N, 3, H, HD).transpose(2, 0, 3, 1, 4)
    q, k, v = qkv[0], qkv[1], qkv[2]
    attn = jax.nn.softmax(jnp.einsum("bhqd,bhkd->bhqk", q, k) * HD ** -0.5, axis=-1)
    vnorm = jnp.linalg.norm(jnp.transpose(v, (0, 2, 1, 3)).reshape(B, N, C), axis=2)
    score_ref = jnp.sum(attn[:, :, 0], axis=1) * vnorm
    score_ker = selection_scores(x, params["wq_t"], params["wkv_t"],
                                 _make_seg_aug(C, H), H)
    assert jnp.allclose(score_ker, score_ref, rtol=5e-3, atol=1e-4), "score mismatch"

    # --- validation of kernel 2 against first-occurrence argmin ---
    ys_vec = params["ys"][0, :N - 1]
    cdf_test = jnp.sort(jax.random.uniform(kc, (B, N - 1), jnp.float32), axis=1)
    ind_ker = pick_indices(cdf_test, ys_vec)
    ind_ref = jnp.argmin(jnp.abs(ys_vec[None, :, None] - cdf_test[:, None, :]), axis=2)
    assert jnp.array_equal(ind_ker, ind_ref), "pick-index mismatch"

    assert x_out.shape == (B, N, C) and selected_x.shape == (B, N, C)
    print("KERNEL_OK")
</pallas_src>

<mosaic_0001>
module attributes {stable_mosaic.version = 11 : i64} {
  func.func @_selection_kernel(%arg0: i32, %arg1: memref<2x8x32xbf16, #tpu.memory_space<vmem>>, %arg2: memref<32x32xbf16, #tpu.memory_space<vmem>>, %arg3: memref<32x64xbf16, #tpu.memory_space<vmem>>, %arg4: memref<64x9xf32, #tpu.memory_space<vmem>>, %arg5: memref<2x1x8xf32, #tpu.memory_space<vmem>>) attributes {dimension_semantics = [#tpu.dimension_semantics<parallel>], iteration_bounds = array<i64: 1>, scalar_prefetch = 0 : i64, scratch_operands = 0 : i64, tpu.core_type = #tpu.core_type<tc>, window_params = [{transform_indices = @transform_0, window_bounds = array<i64: 2, 8, 32>}, {pipeline_mode = #tpu.pipeline_mode<synchronous>, transform_indices = @transform_1, window_bounds = array<i64: 32, 32>}, {pipeline_mode = #tpu.pipeline_mode<synchronous>, transform_indices = @transform_2, window_bounds = array<i64: 32, 64>}, {pipeline_mode = #tpu.pipeline_mode<synchronous>, transform_indices = @transform_3, window_bounds = array<i64: 64, 9>}, {transform_indices = @transform_4, window_bounds = array<i64: 2, 1, 8>}]} {
    %c0 = arith.constant 0 : index
    %c0_0 = arith.constant 0 : index
    %c0_1 = arith.constant 0 : index
    %0 = vector.load %arg1[%c0, %c0_0, %c0_1] : memref<2x8x32xbf16, #tpu.memory_space<vmem>>, vector<2x8x32xbf16>
    %1 = vector.extract_strided_slice %0 {offsets = [0, 0, 0], sizes = [2, 1, 32], strides = [1, 1, 1]} : vector<2x8x32xbf16> to vector<2x1x32xbf16>
    %2 = vector.shape_cast %1 : vector<2x1x32xbf16> to vector<2x32xbf16>
    %c0_2 = arith.constant 0 : index
    %c0_3 = arith.constant 0 : index
    %3 = vector.load %arg2[%c0_2, %c0_3] : memref<32x32xbf16, #tpu.memory_space<vmem>>, vector<32x32xbf16>
    %cst = arith.constant dense<0.000000e+00> : vector<2x32xf32>
    %4 = tpu.matmul %2, %3, %cst {dimension_numbers = #tpu.dot_dimension_numbers<[1], [0], [0], [1], [0, 0, 1, 1], [], []>} : vector<2x32xbf16>, vector<32x32xbf16>, vector<2x32xf32> -> vector<2x32xf32>
    %cst_4 = arith.constant 5.000000e-01 : f32
    %5 = vector.broadcast %cst_4 : f32 to vector<2x32xf32>
    %6 = arith.mulf %4, %5 : vector<2x32xf32>
    %7 = vector.shape_cast %0 : vector<2x8x32xbf16> to vector<16x32xbf16>
    %c0_5 = arith.constant 0 : index
    %c0_6 = arith.constant 0 : index
    %8 = vector.load %arg3[%c0_5, %c0_6] : memref<32x64xbf16, #tpu.memory_space<vmem>>, vector<32x64xbf16>
    %cst_7 = arith.constant dense<0.000000e+00> : vector<16x64xf32>
    %9 = tpu.matmul %7, %8, %cst_7 {dimension_numbers = #tpu.dot_dimension_numbers<[1], [0], [0], [1], [0, 0, 1, 1], [], []>} : vector<16x32xbf16>, vector<32x64xbf16>, vector<16x64xf32> -> vector<16x64xf32>
    %10 = vector.shape_cast %9 : vector<16x64xf32> to vector<2x8x64xf32>
    %11 = vector.extract_strided_slice %10 {offsets = [0, 0, 0], sizes = [2, 8, 32], strides = [1, 1, 1]} : vector<2x8x64xf32> to vector<2x8x32xf32>
    %12 = vector.extract_strided_slice %10 {offsets = [0, 0, 32], sizes = [2, 8, 32], strides = [1, 1, 1]} : vector<2x8x64xf32> to vector<2x8x32xf32>
    %13 = vector.shape_cast %6 : vector<2x32xf32> to vector<2x1x32xf32>
    %14 = vector.broadcast %13 : vector<2x1x32xf32> to vector<2x8x32xf32>
    %15 = arith.mulf %11, %14 : vector<2x8x32xf32>
    %16 = arith.mulf %12, %12 : vector<2x8x32xf32>
    %17 = tpu.concatenate %15, %16 in 2 : vector<2x8x32xf32>, vector<2x8x32xf32> -> vector<2x8x64xf32>
    %18 = vector.shape_cast %17 : vector<2x8x64xf32> to vector<16x64xf32>
    %c0_8 = arith.constant 0 : index
    %c0_9 = arith.constant 0 : index
    %19 = vector.load %arg4[%c0_8, %c0_9] : memref<64x9xf32, #tpu.memory_space<vmem>>, vector<64x9xf32>
    %cst_10 = arith.constant dense<0.000000e+00> : vector<16x9xf32>
    %20 = tpu.matmul %18, %19, %cst_10 {dimension_numbers = #tpu.dot_dimension_numbers<[1], [0], [0], [1], [0, 0, 1, 1], [], []>} : vector<16x64xf32>, vector<64x9xf32>, vector<16x9xf32> -> vector<16x9xf32>
    %21 = vector.shape_cast %20 : vector<16x9xf32> to vector<2x8x9xf32>
    %22 = vector.extract_strided_slice %21 {offsets = [0, 0, 0], sizes = [2, 8, 8], strides = [1, 1, 1]} : vector<2x8x9xf32> to vector<2x8x8xf32>
    %23 = vector.extract_strided_slice %21 {offsets = [0, 0, 8], sizes = [2, 8, 1], strides = [1, 1, 1]} : vector<2x8x9xf32> to vector<2x8x1xf32>
    %24 = vector.shape_cast %23 : vector<2x8x1xf32> to vector<2x8xf32>
    %cst_11 = arith.constant dense<0xFF800000> : vector<2x8xf32>
    %25 = vector.multi_reduction <maximumf>, %22, %cst_11 [1] : vector<2x8x8xf32> to vector<2x8xf32>
    %26 = vector.shape_cast %25 : vector<2x8xf32> to vector<2x1x8xf32>
    %27 = vector.broadcast %26 : vector<2x1x8xf32> to vector<2x8x8xf32>
    %28 = arith.subf %22, %27 : vector<2x8x8xf32>
    %29 = math.exp %28 : vector<2x8x8xf32>
    %cst_12 = arith.constant dense<0.000000e+00> : vector<2x8xf32>
    %30 = vector.multi_reduction <add>, %29, %cst_12 [1] : vector<2x8x8xf32> to vector<2x8xf32>
    %31 = vector.shape_cast %30 : vector<2x8xf32> to vector<2x1x8xf32>
    %32 = tpu.reciprocal %31 {approx = true} : vector<2x1x8xf32> -> vector<2x1x8xf32>
    %33 = vector.broadcast %32 : vector<2x1x8xf32> to vector<2x8x8xf32>
    %34 = arith.mulf %29, %33 : vector<2x8x8xf32>
    %cst_13 = arith.constant dense<0.000000e+00> : vector<2x8xf32>
    %35 = vector.multi_reduction <add>, %34, %cst_13 [2] : vector<2x8x8xf32> to vector<2x8xf32>
    %36 = math.sqrt %24 : vector<2x8xf32>
    %37 = arith.mulf %35, %36 : vector<2x8xf32>
    %c0_14 = arith.constant 0 : index
    %c0_15 = arith.constant 0 : index
    %c0_16 = arith.constant 0 : index
    %38 = vector.load %arg5[%c0_14, %c0_15, %c0_16] : memref<2x1x8xf32, #tpu.memory_space<vmem>>, vector<2x1x8xf32>
    %39 = vector.shape_cast %38 : vector<2x1x8xf32> to vector<2x8xf32>
    %40 = vector.shape_cast %37 : vector<2x8xf32> to vector<2x1x8xf32>
    tpu.vector_store %arg5[%c0_14, %c0_15, %c0_16], %40 {strides = array<i32>} : memref<2x1x8xf32, #tpu.memory_space<vmem>>, vector<2x1x8xf32>,
    return
  }
  func.func @transform_0(%arg0: i32) -> (i32, i32, i32) {
    %c0_i32 = arith.constant 0 : i32
    %c0_i32_0 = arith.constant 0 : i32
    %c0_i32_1 = arith.constant 0 : i32
    return %arg0, %c0_i32, %c0_i32_0 : i32, i32, i32
  }
  func.func @transform_1(%arg0: i32) -> (i32, i32) {
    %c0_i32 = arith.constant 0 : i32
    %c0_i32_0 = arith.constant 0 : i32
    %c0_i32_1 = arith.constant 0 : i32
    return %c0_i32, %c0_i32_0 : i32, i32
  }
  func.func @transform_2(%arg0: i32) -> (i32, i32) {
    %c0_i32 = arith.constant 0 : i32
    %c0_i32_0 = arith.constant 0 : i32
    %c0_i32_1 = arith.constant 0 : i32
    return %c0_i32, %c0_i32_0 : i32, i32
  }
  func.func @transform_3(%arg0: i32) -> (i32, i32) {
    %c0_i32 = arith.constant 0 : i32
    %c0_i32_0 = arith.constant 0 : i32
    %c0_i32_1 = arith.constant 0 : i32
    return %c0_i32, %c0_i32_0 : i32, i32
  }
  func.func @transform_4(%arg0: i32) -> (i32, i32, i32) {
    %c0_i32 = arith.constant 0 : i32
    %c0_i32_0 = arith.constant 0 : i32
    %c0_i32_1 = arith.constant 0 : i32
    return %arg0, %c0_i32, %c0_i32_0 : i32, i32, i32
  }
}

</mosaic_0001>

<llo_original>
// kernel: tpu_custom_call.1
$region0: #{tpu_custom_call.1}
  #allocation0 [shape = 'u32[]', space=smem, size = 0x4, offset = 0x4, fixed_abs, tag = 'smem constant byte address 0x4 - core index']
  #allocation1 [shape = 'u32[144,128]{1,0:T(1,128)}', space=vmem, size = 0x12000, scoped, tag = 'internal scratch']
  %s0 = inlined_call_operand.vmem [shape: bf16[2,8,32], index: 0, kind: input, shape index: {}]
  %s1 = inlined_call_operand.vmem [shape: bf16[32,32], index: 1, kind: input, shape index: {}]
  %s2 = inlined_call_operand.vmem [shape: bf16[32,64], index: 2, kind: input, shape index: {}]
  %s3 = inlined_call_operand.vmem [shape: f32[64,9], index: 3, kind: input, shape index: {}]
  %s4 = inlined_call_operand.hbm [shape: f32[2,1,8], index: 4, kind: output, shape index: {}]
  %s5 = sld [smem:[#allocation0]]
  $region26: #{tpu_custom_call.1} parent=0
    _
  %s7 = ssub.s32 1, %s5
  %s8 = scalar_select 0, %s7, %s5
  $region1: #{tpu_custom_call.1} parent=0
    #allocation2 [shape = 'u8[1024]{0}', space=vmem, size = 0x400, scoped, tag = 'output window, operand 0, single buffered']
    #allocation3 [shape = 's32[1]{0}', space=sflag, size = 0x4, scoped, tag = 'scoped memory for tpu_custom_call.1']
    %9 = vsyncpa [#allocation3], 0
    // Predicated region
    $region2: #{tpu_custom_call.1} parent=1 // pred_check
      _
    $region3: #{tpu_custom_call.1} parent=1 // pred_check_branch
      %11 = sbr.rel (0) target = $region5
    $region4: #{tpu_custom_call.1} parent=1 // pred_region
      _
    $region5: #{tpu_custom_call.1} parent=1 // pred_fallthru
      _
    // Predicated region
    $region6: #{tpu_custom_call.1} parent=1 // pred_check
      _
    $region7: #{tpu_custom_call.1} parent=1 // pred_check_branch
      %13 = sbr.rel (0) target = $region9
    $region8: #{tpu_custom_call.1} parent=1 // pred_region
      _
    $region9: #{tpu_custom_call.1} parent=1 // pred_fallthru
      _
    // Predicated region
    $region10: #{tpu_custom_call.1} parent=1 // pred_check
      _
    $region11: #{tpu_custom_call.1} parent=1 // pred_check_branch
      %15 = sbr.rel (0) target = $region13
    $region12: #{tpu_custom_call.1} parent=1 // pred_region
      _
    $region13: #{tpu_custom_call.1} parent=1 // pred_fallthru
      _
    // Predicated region
    $region14: #{tpu_custom_call.1} parent=1 // pred_check
      _
    $region15: #{tpu_custom_call.1} parent=1 // pred_check_branch
      %17 = sbr.rel (0) target = $region17
    $region16: #{tpu_custom_call.1} parent=1 // pred_region
      _
    $region17: #{tpu_custom_call.1} parent=1 // pred_fallthru
      _
    %v19 = vld [vmem:[%s0] sm:$0xf]
    %v20 = vld [vmem:[%s0 + $0x4] sm:$0xf]
    %v21 = vld [vmem:[%s1] sm:$0xf]
    %v22 = vld [vmem:[%s1 + $0x4] sm:$0xf]
    %v23 = vld [vmem:[%s1 + $0x8] sm:$0xf]
    %v24 = vld [vmem:[%s1 + $0xc] sm:$0xf]
    %v27 = vunpack.c.l.b16 %v19
    %v28 = vunpack.c.l.b16 %v20
    %v29 = vpack.c.b16 %v27, %v27
    %v30 = vpack.c.b16 %v28, %v28
    %v31 = vunpack.c.l.b16 %v29
    %v32 = vunpack.c.l.b16 %v30
    %v33 = vrot.slane %v32, 7
    %vm34 = vcmask 1041409
    %v35 = vsel %vm34, %v33, %v31
    %v36 = vpack.c.b16 %v35, %v35
    %v41 = vunpack.c.l.b16 %v21
    %v42 = vunpack.c.l.b16 %v22
    %v43 = vunpack.c.l.b16 %v23
    %v44 = vunpack.c.l.b16 %v24
    %v45 = vpack.c.b16 %v42, %v41
    %v46 = vpack.c.b16 %v44, %v43
    %vm49 = vcmask 261120
    %v51 = vsel %vm49, %v36, 0
    %53 = vmatprep.subr.bf16.mxu0 0
    %54 = vmatpush1.bf16.msra.mxu0 0
    %55 = vmatprep.subr.bf16.mxu0 0
    %56 = vmatpush1.bf16.msra.mxu0 0
    %57 = vmatprep.subr.bf16.mxu0 0
    %58 = vmatpush1.bf16.msra.mxu0 0
    %59 = vmatprep.subr.bf16.mxu0 0
    %60 = vmatpush1.bf16.msra.mxu0 0
    %61 = vmatprep.subr.bf16.mxu0 0
    %62 = vmatpush1.bf16.msra.mxu0 0
    %63 = vmatprep.subr.bf16.mxu0 0
    %64 = vmatpush1.bf16.msra.mxu0 0
    %65 = vmatprep.subr.bf16.mxu0 0
    %66 = vmatpush1.bf16.msra.mxu0 %v46
    %67 = vmatprep.subr.bf16.mxu0 0
    %68 = vmatpush1.bf16.msra.mxu0 %v45
    %69 = vmatprep.subr.bf16.mxu0 0
    %70 = vmatpush2.bf16.msra.mxu0 0
    %71 = vmatprep.subr.bf16.mxu0 0
    %72 = vmatpush2.bf16.msra.mxu0 0
    %73 = vmatprep.subr.bf16.mxu0 0
    %74 = vmatpush2.bf16.msra.mxu0 0
    %75 = vmatprep.subr.bf16.mxu0 0
    %76 = vmatpush2.bf16.msra.mxu0 0
    %77 = vmatprep.subr.bf16.mxu0 0
    %78 = vmatpush2.bf16.msra.mxu0 0
    %79 = vmatprep.subr.bf16.mxu0 0
    %80 = vmatpush2.bf16.msra.mxu0 0
    %81 = vmatprep.subr.bf16.mxu0 0
    %82 = vmatpush2.bf16.msra.mxu0 0
    %83 = vmatprep.subr.bf16.mxu0 0
    %84 = vmatpush2.bf16.msra.mxu0 0
    %85 = vmatprep.mubr.bf16.mxu0 0
    %86 = vmatmul.mubr.bf16.gmra.mxu0 %v51
    %v87 = vpop.f32.mrf.mxu0
    %v88 = vadd.f32 0.0, %v87
    %v89 = vpop.f32.mrf.mxu0
    %v90 = vpop.f32.mrf.mxu0
    %v91 = vpop.f32.mrf.mxu0
    %92 = vdwg.mxu0
    %v93 = vmul.f32 %v88, 0.5
    %v94 = vld [vmem:[%s2] sm:$0xf]
    %v95 = vld [vmem:[%s2 + $0x4] sm:$0xf]
    %v96 = vld [vmem:[%s2 + $0x8] sm:$0xf]
    %v97 = vld [vmem:[%s2 + $0xc] sm:$0xf]
    %v98 = vpack.c.b16 %v28, %v27
    %v103 = vunpack.c.l.b16 %v94
    %v104 = vunpack.c.l.b16 %v95
    %v105 = vunpack.c.l.b16 %v96
    %v106 = vunpack.c.l.b16 %v97
    %v107 = vpack.c.b16 %v104, %v103
    %v108 = vpack.c.b16 %v106, %v105
    %v112 = vsel %vm49, %v98, 0
    %114 = vmatprep.subr.bf16.mxu0 0
    %115 = vmatpush1.bf16.msra.mxu0 0
    %116 = vmatprep.subr.bf16.mxu0 0
    %117 = vmatpush1.bf16.msra.mxu0 0
    %118 = vmatprep.subr.bf16.mxu0 0
    %119 = vmatpush1.bf16.msra.mxu0 0
    %120 = vmatprep.subr.bf16.mxu0 0
    %121 = vmatpush1.bf16.msra.mxu0 0
    %122 = vmatprep.subr.bf16.mxu0 0
    %123 = vmatpush1.bf16.msra.mxu0 0
    %124 = vmatprep.subr.bf16.mxu0 0
    %125 = vmatpush1.bf16.msra.mxu0 0
    %126 = vmatprep.subr.bf16.mxu0 0
    %127 = vmatpush1.bf16.msra.mxu0 %v108
    %128 = vmatprep.subr.bf16.mxu0 0
    %129 = vmatpush1.bf16.msra.mxu0 %v107
    %130 = vmatprep.subr.bf16.mxu0 0
    %131 = vmatpush2.bf16.msra.mxu0 0
    %132 = vmatprep.subr.bf16.mxu0 0
    %133 = vmatpush2.bf16.msra.mxu0 0
    %134 = vmatprep.subr.bf16.mxu0 0
    %135 = vmatpush2.bf16.msra.mxu0 0
    %136 = vmatprep.subr.bf16.mxu0 0
    %137 = vmatpush2.bf16.msra.mxu0 0
    %138 = vmatprep.subr.bf16.mxu0 0
    %139 = vmatpush2.bf16.msra.mxu0 0
    %140 = vmatprep.subr.bf16.mxu0 0
    %141 = vmatpush2.bf16.msra.mxu0 0
    %142 = vmatprep.subr.bf16.mxu0 0
    %143 = vmatpush2.bf16.msra.mxu0 0
    %144 = vmatprep.subr.bf16.mxu0 0
    %145 = vmatpush2.bf16.msra.mxu0 0
    %146 = vmatprep.mubr.bf16.mxu0 0
    %147 = vmatmul.mubr.bf16.gmra.mxu0 %v112
    %v148 = vpop.f32.mrf.mxu0
    %v149 = vadd.f32 0.0, %v148
    %v150 = vpop.f32.mrf.mxu0
    %v151 = vpop.f32.mrf.mxu0
    %v152 = vadd.f32 0.0, %v151
    %v153 = vpop.f32.mrf.mxu0
    %154 = vdwg.mxu0
    %v157 = vunpack.c.l.s4 1966171168
    %v158 = vunpack.c.0.s8 %v157
    %v159 = vlaneseq
    %v160 = vshrl.u32 %v159, 7
    %v161 = vsub.s32 %v158, %v160
    %v162 = vrot.slane %v93, %v161
    %v163 = vcombine.high %v162, %v162
    %v165 = vunpack.c.l.s4 1966171168
    %v166 = vunpack.c.0.s8 %v165
    %v167 = vlaneseq
    %v168 = vshrl.u32 %v167, 7
    %v169 = vsub.s32 %v166, %v168
    %v170 = vrot.slane %v162, %v169
    %v172 = vunpack.c.l.s4 1966171168
    %v173 = vunpack.c.0.s8 %v172
    %v174 = vlaneseq
    %v175 = vshrl.u32 %v174, 7
    %v176 = vsub.s32 %v173, %v175
    %v177 = vrot.slane %v163, %v176
    %v178 = vlaneseq
    %v179 = vshrl.u32 %v178, 7
    %v180 = vsub.s32 0, %v179
    %v181 = vrot.slane %v170, %v180
    %v182 = vlaneseq
    %v183 = vshrl.u32 %v182, 7
    %v184 = vsub.s32 0, %v183
    %v185 = vrot.slane %v177, %v184
    %v188 = vmul.f32 %v149, %v181
    %v189 = vmul.f32 %v152, %v185
    %v190 = vmul.f32 %v149, %v149
    %v191 = vmul.f32 %v152, %v152
    %v192 = vsel %vm49, %v188, %v190
    %v193 = vsel %vm49, %v189, %v191
    %v194 = vld [vmem:[%s3] sm:$0xff]
    %v195 = vld [vmem:[%s3 + $0x8] sm:$0xff]
    %v196 = vld [vmem:[%s3 + $0x10] sm:$0xff]
    %v197 = vld [vmem:[%s3 + $0x18] sm:$0xff]
    %v198 = vld [vmem:[%s3 + $0x20] sm:$0xff]
    %v199 = vld [vmem:[%s3 + $0x28] sm:$0xff]
    %v200 = vld [vmem:[%s3 + $0x30] sm:$0xff]
    %v201 = vld [vmem:[%s3 + $0x38] sm:$0xff]
    %vm202 = vcmask 523264
    %v204 = vsel %vm202, %v192, 0
    %v207 = vsel %vm202, %v193, 0
    %209 = vmatprep.subr.mxu0 0.0
    %210 = vmatpush1.msra.mxu0 0.0
    %211 = vmatprep.subr.mxu0 0.0
    %212 = vmatpush1.msra.mxu0 0.0
    %213 = vmatprep.subr.mxu0 0.0
    %214 = vmatpush1.msra.mxu0 0.0
    %215 = vmatprep.subr.mxu0 0.0
    %216 = vmatpush1.msra.mxu0 0.0
    %217 = vmatprep.subr.mxu0 0.0
    %218 = vmatpush1.msra.mxu0 0.0
    %219 = vmatprep.subr.mxu0 0.0
    %220 = vmatpush1.msra.mxu0 0.0
    %221 = vmatprep.subr.mxu0 0.0
    %222 = vmatpush1.msra.mxu0 0.0
    %223 = vmatprep.subr.mxu0 0.0
    %224 = vmatpush1.msra.mxu0 0.0
    %225 = vmatprep.subr.mxu0 0.0
    %226 = vmatpush1.msra.mxu0 %v201
    %227 = vmatprep.subr.mxu0 0.0
    %228 = vmatpush1.msra.mxu0 %v200
    %229 = vmatprep.subr.mxu0 0.0
    %230 = vmatpush1.msra.mxu0 %v199
    %231 = vmatprep.subr.mxu0 0.0
    %232 = vmatpush1.msra.mxu0 %v198
    %233 = vmatprep.subr.mxu0 0.0
    %234 = vmatpush1.msra.mxu0 %v197
    %235 = vmatprep.subr.mxu0 0.0
    %236 = vmatpush1.msra.mxu0 %v196
    %237 = vmatprep.subr.mxu0 0.0
    %238 = vmatpush1.msra.mxu0 %v195
    %239 = vmatprep.subr.mxu0 0.0
    %240 = vmatpush1.msra.mxu0 %v194
    %241 = vmatprep.subr.mxu0 0.0
    %242 = vmatpush2.msra.mxu0 0.0
    %243 = vmatprep.subr.mxu0 0.0
    %244 = vmatpush2.msra.mxu0 0.0
    %245 = vmatprep.subr.mxu0 0.0
    %246 = vmatpush2.msra.mxu0 0.0
    %247 = vmatprep.subr.mxu0 0.0
    %248 = vmatpush2.msra.mxu0 0.0
    %249 = vmatprep.subr.mxu0 0.0
    %250 = vmatpush2.msra.mxu0 0.0
    %251 = vmatprep.subr.mxu0 0.0
    %252 = vmatpush2.msra.mxu0 0.0
    %253 = vmatprep.subr.mxu0 0.0
    %254 = vmatpush2.msra.mxu0 0.0
    %255 = vmatprep.subr.mxu0 0.0
    %256 = vmatpush2.msra.mxu0 0.0
    %257 = vmatprep.subr.mxu0 0.0
    %258 = vmatpush2.msra.mxu0 0.0
    %259 = vmatprep.subr.mxu0 0.0
    %260 = vmatpush2.msra.mxu0 0.0
    %261 = vmatprep.subr.mxu0 0.0
    %262 = vmatpush2.msra.mxu0 0.0
    %263 = vmatprep.subr.mxu0 0.0
    %264 = vmatpush2.msra.mxu0 0.0
    %265 = vmatprep.subr.mxu0 0.0
    %266 = vmatpush2.msra.mxu0 0.0
    %267 = vmatprep.subr.mxu0 0.0
    %268 = vmatpush2.msra.mxu0 0.0
    %269 = vmatprep.subr.mxu0 0.0
    %270 = vmatpush2.msra.mxu0 0.0
    %271 = vmatprep.subr.mxu0 0.0
    %272 = vmatpush2.msra.mxu0 0.0
    %273 = vmatprep.mubr.f32.mxu0 0.0
    %274 = vmatmul.mubr.f32.gmra.mxu0 %v204
    %v275 = vpop.f32.mrf.mxu0
    %v276 = vadd.f32 0.0, %v275
    %v277 = vpop.f32.mrf.mxu0
    %278 = vmatprep.mubr.f32.mxu0 0.0
    %279 = vmatmul.mubr.f32.gmra.mxu0 %v207
    %v280 = vpop.f32.mrf.mxu0
    %v281 = vadd.f32 0.0, %v280
    %v282 = vpop.f32.mrf.mxu0
    %283 = vdwg.mxu0
    %vm284 = vcmask 64512
    %v285 = vsel %vm284, %v276, -inf
    %v286 = vrot.slane %v285, 4
    %v287 = vmax.f32 %v285, %v286
    %v288 = vrot.slane %v287, 2
    %v289 = vmax.f32 %v287, %v288
    %v290 = vrot.slane %v289, 1
    %v291 = vmax.f32 %v289, %v290
    %v292 = vsel %vm284, %v281, -inf
    %v293 = vrot.slane %v292, 4
    %v294 = vmax.f32 %v292, %v293
    %v295 = vrot.slane %v294, 2
    %v296 = vmax.f32 %v294, %v295
    %v297 = vrot.slane %v296, 1
    %v298 = vmax.f32 %v296, %v297
    %v299 = vsub.f32 %v276, %v291
    %v300 = vsub.f32 %v281, %v298
    %v301 = vmul.f32 %v299, 1.442695
    %v302 = vpow.pop %v301
    %v303 = vmul.f32 %v300, 1.442695
    %v304 = vpow.pop %v303
    %v305 = vsel %vm284, %v302, 0.0
    %v306 = vrot.slane %v305, 4
    %v307 = vadd.f32 %v305, %v306
    %v308 = vrot.slane %v307, 2
    %v309 = vadd.f32 %v307, %v308
    %v310 = vrot.slane %v309, 1
    %v311 = vadd.f32 %v309, %v310
    %v312 = vsel %vm284, %v304, 0.0
    %v313 = vrot.slane %v312, 4
    %v314 = vadd.f32 %v312, %v313
    %v315 = vrot.slane %v314, 2
    %v316 = vadd.f32 %v314, %v315
    %v317 = vrot.slane %v316, 1
    %v318 = vadd.f32 %v316, %v317
    %v319 = vrcp.pop %v311
    %v320 = vrcp.pop %v318
    %v321 = vmul.f32 %v302, %v319
    %v322 = vmul.f32 %v304, %v320
    %v323 = vsel %vm284, %v321, 0.0
    %324 = vadd.xlane.f32.xlu0 %v323
    %v325 = vpop.xlane.xlu0 %324
    %v326 = vsel %vm284, %v322, 0.0
    %327 = vadd.xlane.f32.xlu0 %v326
    %v328 = vpop.xlane.xlu0 %327
    %v329 = vrsqrt.pop %v276
    %v330 = vmul.f32 %v276, %v329
    %vm331 = vcmp.eq.f32.partialorder %v276, inf
    %v332 = vsel %vm331, %v276, %v330
    %vm333 = vcmp.eq.f32.partialorder %v276, 0.0
    %v334 = vand.u32 %v276, 2147483648
    %v335 = vsel %vm333, %v334, %v332
    %v336 = vrsqrt.pop %v281
    %v337 = vmul.f32 %v281, %v336
    %vm338 = vcmp.eq.f32.partialorder %v281, inf
    %v339 = vsel %vm338, %v281, %v337
    %vm340 = vcmp.eq.f32.partialorder %v281, 0.0
    %v341 = vand.u32 %v281, 2147483648
    %v342 = vsel %vm340, %v341, %v339
    %v343 = vmul.f32 %v325, %v335
    %v344 = vmul.f32 %v328, %v342
    %347 = vset.pattern.permute.xlu0 8
    %348 = vperm.xlu0 %347, %v343
    %v349 = vpop.permute.xlu0 %348
    %350 = vset.pattern.permute.xlu0 8
    %351 = vperm.xlu0 %350, %v344
    %v352 = vpop.permute.xlu0 %351
    %v353 = vlaneseq
    %v354 = vand.u32 %v353, 127
    %v355 = vlaneseq
    %v356 = vshrl.u32 %v355, 7
    %v357 = vsub.s32 %v354, %v356
    %v358 = vrot.slane %v349, %v357
    %v359 = vlaneseq
    %v360 = vshrl.u32 %v359, 7
    %v361 = vsub.s32 %v354, %v360
    %v362 = vrot.slane %v352, %v361
    %vm365 = vcmask 57344
    %366 = vst.msk [vmem:[#allocation2] sm:$0x1] %vm365, %v358
    %367 = vst.msk [vmem:[#allocation2 + $0x1] sm:$0x1] %vm365, %v362
    // Predicated region
    $region18: #{tpu_custom_call.1} parent=1 // pred_check
      _
    $region19: #{tpu_custom_call.1} parent=1 // pred_check_branch
      %369 = sbr.rel (0) target = $region21
    $region20: #{tpu_custom_call.1} parent=1 // pred_region
      %s371 = ssub.s32 32, 32
      %372 = vsyncadd [#allocation3], %s371
      %s373 = sshll.u32 [#allocation2], 4
      %s374 = int_to_ptr.vmem [resolvable:$true] %s373
      %379 = dma.vmem_to_hbm [thread:$0]  %s374, 32, %s4, [#allocation3], 16, 16, 1
    $region21: #{tpu_custom_call.1} parent=1 // pred_fallthru
      _
    // Predicated region
    $region22: #{tpu_custom_call.1} parent=1 // pred_check
      _
    $region23: #{tpu_custom_call.1} parent=1 // pred_check_branch
      %381 = sbr.rel (0) target = $region25
    $region24: #{tpu_custom_call.1} parent=1 // pred_region
      %382 = dma.done [#allocation3], 32
    $region25: #{tpu_custom_call.1} parent=1 // pred_fallthru
      _
    %383 = vsyncpa [#allocation3], 1

</llo_original>
